<compile_context>
chip_gen: v7x
topology: tpu7x:2x2x1
jax: 0.10.0
libtpu: 0.0.40
codegen_flags: <defaults>
</compile_context>

<pallas_src>
import functools
import math

import jax
import jax.numpy as jnp
from jax.experimental import pallas as pl
from jax.experimental.pallas import tpu as pltpu

VIEW_NAME = ["view0", "view1", "view2", "view3", "view4", "view5"]
_LANE = 128


# ----------------------------------------------------------------------------
# Kernel: fused stem conv (transposed im2col matmul, bf16 -> f32 on the MXU)
#         + folded BN bias + ReLU + lane-preserving spatial partial pooling.
# Grid: (B*V "parallel", spatial-tiles "arbitrary"); the (c0, 128) pooled
# accumulator lives in VMEM scratch across the reduction axis.
# ----------------------------------------------------------------------------
def _stem_pool_kernel(a_ref, w_ref, b_ref, o_ref, acc_ref, *, inv_count):
    t = pl.program_id(1)

    @pl.when(t == 0)
    def _():
        acc_ref[...] = jnp.zeros_like(acc_ref)

    # (c0, Kp) bf16 @ (Kp, tm) bf16 -> (c0, tm) f32 on the MXU.
    c = jnp.dot(w_ref[...], a_ref[0], preferred_element_type=jnp.float32)
    c = jnp.maximum(c + b_ref[...], 0.0)               # folded BN bias + ReLU

    # Fold the tile into the (c0, 128) accumulator with 128-aligned static
    # lane slices (pure VPU adds) -- keeps the per-tile reduction off the XLU.
    part = c[:, 0:_LANE]
    for q in range(1, c.shape[1] // _LANE):
        part = part + c[:, q * _LANE:(q + 1) * _LANE]
    acc_ref[...] += part

    @pl.when(t == pl.num_programs(1) - 1)
    def _():
        o_ref[0] = acc_ref[...] * inv_count            # (c0, 128), lane-dense


def stem_pool(patches_t, w_t, b_fold):
    """patches_t: [BV, Kp, S] bf16 (K on sublanes, spatial lane-dense),
       w_t: [c0, Kp], b_fold: [c0, 1]
       -> pooled [BV, c0] f32  (spatial mean of ReLU(conv + folded-BN bias))."""
    BV, Kp, S = patches_t.shape
    c0 = w_t.shape[0]
    if S % _LANE != 0:
        # TODO(synk): spatial extents that are not multiples of 128 need an
        # in-kernel lane mask on the partial sum; real DMHNet sizes (512x1024,
        # 512x512, 32x32 test) are all multiples of 128.
        raise ValueError(f"spatial extent {S} must be a multiple of {_LANE}")

    # Largest 128-multiple spatial tile that divides S, capped at 8192: the
    # double-buffered (Kp, tm) bf16 blocks are then ~5 MiB, comfortably inside
    # every generation's scoped VMEM (16/32/32 MiB default on v5e/v6e/v7x;
    # v7x has 64 MiB physical per TensorCore).
    tm = _LANE
    for cand in (8192, 4096, 2048, 1024, 512, 256, 128):
        if S % cand == 0:
            tm = cand
            break
    n_tiles = S // tm

    kernel = functools.partial(_stem_pool_kernel, inv_count=1.0 / S)
    out_partial = pl.pallas_call(
        kernel,
        out_shape=jax.ShapeDtypeStruct((BV, c0, _LANE), jnp.float32),
        grid=(BV, n_tiles),
        in_specs=[
            pl.BlockSpec((1, Kp, tm), lambda s, t: (s, 0, t)),
            pl.BlockSpec((c0, Kp), lambda s, t: (0, 0)),
            pl.BlockSpec((c0, 1), lambda s, t: (0, 0)),
        ],
        out_specs=pl.BlockSpec((1, c0, _LANE), lambda s, t: (s, 0, 0)),
        scratch_shapes=[pltpu.VMEM((c0, _LANE), jnp.float32)],
        compiler_params=pltpu.CompilerParams(
            dimension_semantics=("parallel", "arbitrary"),
            vmem_limit_bytes=32 * 1024 * 1024),
    )(patches_t.astype(jnp.bfloat16),
      w_t.astype(jnp.bfloat16),
      b_fold.astype(jnp.float32))

    # Finish the tiny (BV, c0, 128) -> (BV, c0) lane reduce in XLA (~32 KB).
    return out_partial.sum(axis=-1)


# ----------------------------------------------------------------------------
# Glue: batched, TRANSPOSED im2col for the 7x7 / stride-2 / pad-3 stem conv.
# Output layout [BV, K, Ho*Wo]: spatial on the minor (lane) axis, K padded on
# the sublane axis only (free in the HBM tiled layout; zero K rows contribute
# exactly 0 to the contraction).
# ----------------------------------------------------------------------------
def im2col_transposed(x_nhwc, kh, kw, stride, pad, k_pad):
    B, H, W, C = x_nhwc.shape
    Ho = (H + 2 * pad - kh) // stride + 1
    Wo = (W + 2 * pad - kw) // stride + 1
    xp = jnp.pad(x_nhwc, ((0, 0), (pad, pad), (pad, pad), (0, 0)))
    cols = []
    for di in range(kh):
        for dj in range(kw):
            cols.append(xp[:, di:di + stride * Ho:stride,
                           dj:dj + stride * Wo:stride, :])
    K = kh * kw * C
    patches = jnp.concatenate(cols, axis=-1)            # [B,Ho,Wo,K] (kh,kw,c)
    patches = patches.reshape(B, Ho * Wo, K)
    patches = jnp.swapaxes(patches, 1, 2)                # [B, K, Ho*Wo]
    if k_pad > K:
        patches = jnp.pad(patches, ((0, 0), (0, k_pad - K), (0, 0)))
    return patches.astype(jnp.bfloat16), Ho, Wo


# ----------------------------------------------------------------------------
# Parameters: eval-mode BN scale and image 1/std folded into the conv weight
# (mean subtraction stays on the input so conv1's zero padding still matches
# the normalized-zero boundary of the original model -> exact).
# ----------------------------------------------------------------------------
def make_params(key, c_in=3, c0=16, nbins=64, k_pad=160):
    ks = jax.random.split(key, 7)
    conv_w = jax.random.normal(ks[0], (7, 7, c_in, c0), jnp.float32) * 0.05
    bn_gamma = 1.0 + 0.1 * jax.random.normal(ks[1], (c0,), jnp.float32)
    bn_beta = 0.1 * jax.random.normal(ks[2], (c0,), jnp.float32)
    bn_mean = 0.05 * jax.random.normal(ks[3], (c0,), jnp.float32)
    bn_var = jnp.abs(1.0 + 0.1 * jax.random.normal(ks[4], (c0,), jnp.float32))
    head_w = jax.random.normal(ks[5], (c0, 4 * nbins), jnp.float32) * 0.1
    head_b = 0.01 * jax.random.normal(ks[6], (4 * nbins,), jnp.float32)

    x_mean = jnp.array([0.485, 0.456, 0.406], jnp.float32)
    x_inv_std = 1.0 / jnp.array([0.229, 0.224, 0.225], jnp.float32)

    bn_scale = bn_gamma * jax.lax.rsqrt(bn_var + 1e-5)
    w = conv_w * x_inv_std[None, None, :, None] * bn_scale[None, None, None, :]
    K = 7 * 7 * c_in
    w_t = w.reshape(K, c0).T                            # (c0, K), (kh,kw,cin)
    w_t = jnp.pad(w_t, ((0, 0), (0, k_pad - K)))        # zero K cols -> exact
    b_fold = (bn_beta - bn_mean * bn_scale).reshape(c0, 1)

    return dict(w_t=w_t, b_fold=b_fold, head_w=head_w, head_b=head_b,
                x_mean=x_mean, c0=c0, nbins=nbins, k_pad=k_pad)


# ----------------------------------------------------------------------------
# Loss helper: numerically stable BCE-with-logits, mean over the bin axis.
# The whole tensor is [4, B, V, nbins] (~2 KB) -- far too small for a kernel,
# so it stays in XLA (per perf review).
# ----------------------------------------------------------------------------
def _bce_with_logits_mean(x, y):
    return jnp.mean(
        jnp.maximum(x, 0.0) - x * y + jnp.log1p(jnp.exp(-jnp.abs(x))), axis=-1)


# ----------------------------------------------------------------------------
# DMHNet forward (simplified)
# ----------------------------------------------------------------------------
def dmhnet_forward(params, p_imgs, xLabels, yLabels, cUpLabels, cDownLabels):
    B, V, _, H, W = p_imgs.shape
    nbins = params["nbins"]
    BV = B * V

    # ----- all views batched: [B,V,3,H,W] -> [B*V,H,W,3]; mean subtraction is
    # a trivial XLA op (1/std + eval-BN scale are folded into the weights).
    x = p_imgs[:, :, :3].reshape(BV, 3, H, W)
    x_nhwc = jnp.transpose(x, (0, 2, 3, 1)) - params["x_mean"]

    # ----- stem conv(7x7/s2/p3) + BN + ReLU + global-average-pool (Pallas) ---
    patches_t, Ho, Wo = im2col_transposed(x_nhwc, 7, 7, 2, 3, params["k_pad"])
    pooled = stem_pool(patches_t, params["w_t"], params["b_fold"])   # [BV, c0]

    # ----- prediction head: tiny (BV,16)@(16,256) matmul in XLA --------------
    head = pooled @ params["head_w"] + params["head_b"]       # [BV, 4*nbins]
    head = head.reshape(B, V, 4 * nbins)
    p_preds_xy = head[..., :2 * nbins].reshape(B, V, nbins, 2)
    p_preds_cud = head[..., 2 * nbins:].reshape(B, V, nbins, 2)
    results = {"p_preds_xy": p_preds_xy, "p_preds_cud": p_preds_cud}

    # ----- calculate_loss: BCE-with-logits over all four label kinds ---------
    logits4 = jnp.stack([p_preds_xy[..., 0], p_preds_xy[..., 1],
                         p_preds_cud[..., 0], p_preds_cud[..., 1]], axis=0)
    labels4 = jnp.stack([xLabels, yLabels, cUpLabels, cDownLabels], axis=0)
    per_view = _bce_with_logits_mean(logits4, labels4).sum(axis=1) / B  # [4,V]

    losses = {"total": jnp.float32(0.0),
              "extra_xLabels": jnp.float32(0.0), "extra_yLabels": jnp.float32(0.0),
              "extra_cUpLabels": jnp.float32(0.0), "extra_cDownLabels": jnp.float32(0.0)}
    alpha = 1.0  # cfg.MODEL.LOSS.ALPHA_PERSPECTIVE default
    for v in range(V):
        lx, ly, lcu, lcd = (per_view[0, v], per_view[1, v],
                            per_view[2, v], per_view[3, v])
        losses["extra_xLabels"] = losses["extra_xLabels"] + lx
        losses["extra_yLabels"] = losses["extra_yLabels"] + ly
        losses["extra_cUpLabels"] = losses["extra_cUpLabels"] + lcu
        losses["extra_cDownLabels"] = losses["extra_cDownLabels"] + lcd
        one_loss = lx + ly + lcu + lcd
        losses["p_" + VIEW_NAME[v]] = one_loss
        losses["total"] = losses["total"] + alpha * one_loss
    return losses, results


# ----------------------------------------------------------------------------
if __name__ == "__main__":
    B, V, H, W = 2, 2, 32, 32
    C0, NBINS = 16, 64

    key = jax.random.PRNGKey(0)
    k_param, k_img, kx, ky, kcu, kcd = jax.random.split(key, 6)

    params = make_params(k_param, c_in=3, c0=C0, nbins=NBINS)

    p_imgs = jax.random.uniform(k_img, (B, V, 3, H, W), jnp.float32)
    xLabels = jax.random.bernoulli(kx, 0.1, (B, V, NBINS)).astype(jnp.float32)
    yLabels = jax.random.bernoulli(ky, 0.1, (B, V, NBINS)).astype(jnp.float32)
    cUpLabels = jax.random.bernoulli(kcu, 0.1, (B, V, NBINS)).astype(jnp.float32)
    cDownLabels = jax.random.bernoulli(kcd, 0.1, (B, V, NBINS)).astype(jnp.float32)

    fwd = jax.jit(functools.partial(dmhnet_forward, params))
    losses, results = fwd(p_imgs, xLabels, yLabels, cUpLabels, cDownLabels)

    jax.block_until_ready(losses["total"])
    jax.block_until_ready(results["p_preds_xy"])
    jax.block_until_ready(results["p_preds_cud"])

    assert results["p_preds_xy"].shape == (B, V, NBINS, 2)
    assert results["p_preds_cud"].shape == (B, V, NBINS, 2)
    assert math.isfinite(float(losses["total"]))
    print("KERNEL_OK")
</pallas_src>

<mosaic_0001>
module attributes {stable_mosaic.version = 11 : i64} {
  func.func @_stem_pool_kernel(%arg0: i32, %arg1: i32, %arg2: memref<1x160x256xbf16, #tpu.memory_space<vmem>>, %arg3: memref<16x160xbf16, #tpu.memory_space<vmem>>, %arg4: memref<16x1xf32, #tpu.memory_space<vmem>>, %arg5: memref<1x16x128xf32, #tpu.memory_space<vmem>>, %arg6: memref<16x128xf32, #tpu.memory_space<vmem>>) attributes {dimension_semantics = [#tpu.dimension_semantics<parallel>, #tpu.dimension_semantics<arbitrary>], iteration_bounds = array<i64: 4, 1>, scalar_prefetch = 0 : i64, scratch_operands = 1 : i64, tpu.core_type = #tpu.core_type<tc>, window_params = [{transform_indices = @transform_0, window_bounds = array<i64: 1, 160, 256>}, {pipeline_mode = #tpu.pipeline_mode<synchronous>, transform_indices = @transform_1, window_bounds = array<i64: 16, 160>}, {pipeline_mode = #tpu.pipeline_mode<synchronous>, transform_indices = @transform_2, window_bounds = array<i64: 16, 1>}, {transform_indices = @transform_3, window_bounds = array<i64: 1, 16, 128>}]} {
    %c0_i32 = arith.constant 0 : i32
    %0 = arith.cmpi eq, %arg1, %c0_i32 : i32
    %1 = arith.extui %0 : i1 to i32
    %c0_i32_0 = arith.constant 0 : i32
    %2 = arith.cmpi ne, %1, %c0_i32_0 : i32
    scf.if %2 {
      %cst_14 = arith.constant 0.000000e+00 : f32
      %21 = vector.broadcast %cst_14 : f32 to vector<16x128xf32>
      %c0_15 = arith.constant 0 : index
      %c0_16 = arith.constant 0 : index
      %22 = vector.load %arg6[%c0_15, %c0_16] : memref<16x128xf32, #tpu.memory_space<vmem>>, vector<16x128xf32>
      tpu.vector_store %arg6[%c0_15, %c0_16], %21 {strides = array<i32>} : memref<16x128xf32, #tpu.memory_space<vmem>>, vector<16x128xf32>,
    } else {
    }
    %c0 = arith.constant 0 : index
    %c0_1 = arith.constant 0 : index
    %3 = vector.load %arg3[%c0, %c0_1] : memref<16x160xbf16, #tpu.memory_space<vmem>>, vector<16x160xbf16>
    %c0_2 = arith.constant 0 : index
    %c0_3 = arith.constant 0 : index
    %c0_4 = arith.constant 0 : index
    %4 = vector.load %arg2[%c0_2, %c0_3, %c0_4] : memref<1x160x256xbf16, #tpu.memory_space<vmem>>, vector<1x160x256xbf16>
    %5 = vector.shape_cast %4 : vector<1x160x256xbf16> to vector<160x256xbf16>
    %cst = arith.constant dense<0.000000e+00> : vector<16x256xf32>
    %6 = tpu.matmul %3, %5, %cst {dimension_numbers = #tpu.dot_dimension_numbers<[1], [0], [0], [1], [0, 0, 1, 1], [], []>} : vector<16x160xbf16>, vector<160x256xbf16>, vector<16x256xf32> -> vector<16x256xf32>
    %c0_5 = arith.constant 0 : index
    %c0_6 = arith.constant 0 : index
    %7 = vector.load %arg4[%c0_5, %c0_6] : memref<16x1xf32, #tpu.memory_space<vmem>>, vector<16x1xf32>
    %8 = vector.broadcast %7 : vector<16x1xf32> to vector<16x256xf32>
    %9 = arith.addf %6, %8 : vector<16x256xf32>
    %cst_7 = arith.constant 0.000000e+00 : f32
    %10 = vector.broadcast %cst_7 : f32 to vector<16x256xf32>
    %11 = arith.maximumf %9, %10 : vector<16x256xf32>
    %12 = vector.extract_strided_slice %11 {offsets = [0, 0], sizes = [16, 128], strides = [1, 1]} : vector<16x256xf32> to vector<16x128xf32>
    %13 = vector.extract_strided_slice %11 {offsets = [0, 128], sizes = [16, 128], strides = [1, 1]} : vector<16x256xf32> to vector<16x128xf32>
    %14 = arith.addf %12, %13 : vector<16x128xf32>
    %c0_8 = arith.constant 0 : index
    %c0_9 = arith.constant 0 : index
    %15 = vector.load %arg6[%c0_8, %c0_9] : memref<16x128xf32, #tpu.memory_space<vmem>>, vector<16x128xf32>
    %16 = arith.addf %15, %14 : vector<16x128xf32>
    %c0_10 = arith.constant 0 : index
    %c0_11 = arith.constant 0 : index
    %17 = vector.load %arg6[%c0_10, %c0_11] : memref<16x128xf32, #tpu.memory_space<vmem>>, vector<16x128xf32>
    tpu.vector_store %arg6[%c0_10, %c0_11], %16 {strides = array<i32>} : memref<16x128xf32, #tpu.memory_space<vmem>>, vector<16x128xf32>,
    %c0_i32_12 = arith.constant 0 : i32
    %18 = arith.cmpi eq, %arg1, %c0_i32_12 : i32
    %19 = arith.extui %18 : i1 to i32
    %c0_i32_13 = arith.constant 0 : i32
    %20 = arith.cmpi ne, %19, %c0_i32_13 : i32
    scf.if %20 {
      %c0_14 = arith.constant 0 : index
      %c0_15 = arith.constant 0 : index
      %21 = vector.load %arg6[%c0_14, %c0_15] : memref<16x128xf32, #tpu.memory_space<vmem>>, vector<16x128xf32>
      %cst_16 = arith.constant 3.906250e-03 : f32
      %22 = vector.broadcast %cst_16 : f32 to vector<16x128xf32>
      %23 = arith.mulf %21, %22 : vector<16x128xf32>
      %c0_17 = arith.constant 0 : index
      %c0_18 = arith.constant 0 : index
      %c0_19 = arith.constant 0 : index
      %24 = vector.load %arg5[%c0_17, %c0_18, %c0_19] : memref<1x16x128xf32, #tpu.memory_space<vmem>>, vector<1x16x128xf32>
      %25 = vector.shape_cast %24 : vector<1x16x128xf32> to vector<16x128xf32>
      %26 = vector.shape_cast %23 : vector<16x128xf32> to vector<1x16x128xf32>
      tpu.vector_store %arg5[%c0_17, %c0_18, %c0_19], %26 {strides = array<i32>} : memref<1x16x128xf32, #tpu.memory_space<vmem>>, vector<1x16x128xf32>,
    } else {
    }
    return
  }
  func.func @transform_0(%arg0: i32, %arg1: i32) -> (i32, i32, i32) {
    %c0_i32 = arith.constant 0 : i32
    %c0_i32_0 = arith.constant 0 : i32
    return %arg0, %c0_i32, %arg1 : i32, i32, i32
  }
  func.func @transform_1(%arg0: i32, %arg1: i32) -> (i32, i32) {
    %c0_i32 = arith.constant 0 : i32
    %c0_i32_0 = arith.constant 0 : i32
    %c0_i32_1 = arith.constant 0 : i32
    return %c0_i32, %c0_i32_0 : i32, i32
  }
  func.func @transform_2(%arg0: i32, %arg1: i32) -> (i32, i32) {
    %c0_i32 = arith.constant 0 : i32
    %c0_i32_0 = arith.constant 0 : i32
    %c0_i32_1 = arith.constant 0 : i32
    return %c0_i32, %c0_i32_0 : i32, i32
  }
  func.func @transform_3(%arg0: i32, %arg1: i32) -> (i32, i32, i32) {
    %c0_i32 = arith.constant 0 : i32
    %c0_i32_0 = arith.constant 0 : i32
    %c0_i32_1 = arith.constant 0 : i32
    return %arg0, %c0_i32, %c0_i32_0 : i32, i32, i32
  }
}

</mosaic_0001>

<llo_original>
// kernel: dmhnet_forward.1
$region0: #{dmhnet_forward.1}
  #allocation0 [shape = 'u32[]', space=smem, size = 0x4, offset = 0x4, fixed_abs, tag = 'smem constant byte address 0x4 - core index']
  #allocation1 [shape = 'u32[144,128]{1,0:T(1,128)}', space=vmem, size = 0x12000, scoped, tag = 'internal scratch']
  #allocation2 [shape = 'f32[16,128]{1,0:T(8,128)}', space=vmem, size = 0x2000, scoped, tag = 'scratch operand']
  %s0 = inlined_call_operand.vmem [shape: bf16[4,160,256], index: 0, kind: input, shape index: {}]
  %s1 = inlined_call_operand.vmem [shape: bf16[16,160], index: 1, kind: input, shape index: {}]
  %s2 = inlined_call_operand.vmem [shape: f32[16,1], index: 2, kind: input, shape index: {}]
  %s3 = inlined_call_operand.vmem [shape: f32[4,16,128], index: 3, kind: output, shape index: {}]
  %s4 = sld [smem:[#allocation0]]
  $region53: #{dmhnet_forward.1} parent=0
    _
  %s6 = ssub.s32 1, %s4
  %s7 = scalar_select 0, %s6, %s4
  loop: start=0, step=1, limit=6
  $region2: #{dmhnet_forward.1} parent=0 // loop_pre_header
    _
  $region3: #{dmhnet_forward.1} parent=0 // loop_header
    %s9 = sphi 0, %s13
    %p10 = scmp.ge.s32.totalorder %s9, 6
    %s16 = sphi 0, %s28
    %s17 = sphi 0, %s24
    %s18 = sphi 0, %s16
    %s19 = sphi 0, %s17
    %s20 = sphi 0, %s18
    %s21 = sphi 0, %s19
    %s33 = sphi 0, %s35
    %s36 = sphi 0, %s33
    %s37 = sphi 0, %s36
    %s53 = sphi 0, %s37
    %s57 = sphi 0, %s57
    %s59 = sphi 0, %s57
    %s60 = sphi 0, %s59
    %s74 = sphi 0, %s60
    %s78 = sphi 0, %s78
    %s80 = sphi 0, %s78
    %s81 = sphi 0, %s80
    %s95 = sphi 0, %s81
    %s101 = sphi 0, %s103
    %s104 = sphi 0, %s101
    %s105 = sphi 0, %s104
    %s121 = sphi 0, %s105
  $region4: #{dmhnet_forward.1} parent=0 // loop_header_branch
    %12 = sbr.rel (%p10) target = $region8
  $region5: #{dmhnet_forward.1} parent=0 // loop_body
    %s14 = ssub.s32 %s9, 1
    %s15 = ssub.s32 %s9, 2
    %s22 = sadd.s32 1, %s17
    %p23 = scmp.ge.s32.totalorder %s22, 1
    %s24 = scalar_select %p23, 0, %s22
    %s25 = sadd.s32 1, %s16
    %s26 = scalar_select %p23, %s25, %s16
    %p27 = scmp.ge.s32.totalorder %s26, 4
    %s28 = scalar_select %p27, 0, %s26
    %s29 = ssub.s32 %s16, %s28
    %s30 = ssub.s32 %s17, %s24
    %s31 = sor.u32 %s29, %s30
    %p32 = scmp.eq.s32.totalorder %s31, 0
    %s34 = sadd.s32 %s33, 1
    %s35 = scalar_select %p32, %s33, %s34
    %p38 = pneg %p32
    %p39 = scmp.eq.s32.totalorder %s9, 3
    %p40 = por %p38, %p39
    %p41 = scmp.ne.s32.totalorder %s33, %s36
    %p42 = scmp.eq.s32.totalorder %s9, 0
    %p43 = por %p41, %p42
    %p44 = scmp.ne.s32.totalorder %s33, %s36
    %p45 = scmp.eq.s32.totalorder %s14, 3
    %p46 = por %p44, %p45
    %p47 = scmp.ne.s32.totalorder %s36, %s37
    %p48 = scmp.eq.s32.totalorder %s14, 0
    %p49 = por %p47, %p48
    %p50 = scmp.ne.s32.totalorder %s36, %s37
    %p51 = scmp.eq.s32.totalorder %s15, 3
    %p52 = por %p50, %p51
    %p54 = scmp.ne.s32.totalorder %s37, %s53
    %p55 = scmp.eq.s32.totalorder %s15, 0
    %p56 = por %p54, %p55
    %s58 = sadd.s32 %s57, 1
    %p61 = scmp.eq.s32.totalorder %s9, 3
    %p62 = scmp.ne.s32.totalorder %s57, %s59
    %p63 = scmp.eq.s32.totalorder %s9, 0
    %p64 = por %p62, %p63
    %p65 = scmp.ne.s32.totalorder %s57, %s59
    %p66 = scmp.eq.s32.totalorder %s14, 3
    %p67 = por %p65, %p66
    %p68 = scmp.ne.s32.totalorder %s59, %s60
    %p69 = scmp.eq.s32.totalorder %s14, 0
    %p70 = por %p68, %p69
    %p71 = scmp.ne.s32.totalorder %s59, %s60
    %p72 = scmp.eq.s32.totalorder %s15, 3
    %p73 = por %p71, %p72
    %p75 = scmp.ne.s32.totalorder %s60, %s74
    %p76 = scmp.eq.s32.totalorder %s15, 0
    %p77 = por %p75, %p76
    %s79 = sadd.s32 %s78, 1
    %p82 = scmp.eq.s32.totalorder %s9, 3
    %p83 = scmp.ne.s32.totalorder %s78, %s80
    %p84 = scmp.eq.s32.totalorder %s9, 0
    %p85 = por %p83, %p84
    %p86 = scmp.ne.s32.totalorder %s78, %s80
    %p87 = scmp.eq.s32.totalorder %s14, 3
    %p88 = por %p86, %p87
    %p89 = scmp.ne.s32.totalorder %s80, %s81
    %p90 = scmp.eq.s32.totalorder %s14, 0
    %p91 = por %p89, %p90
    %p92 = scmp.ne.s32.totalorder %s80, %s81
    %p93 = scmp.eq.s32.totalorder %s15, 3
    %p94 = por %p92, %p93
    %p96 = scmp.ne.s32.totalorder %s81, %s95
    %p97 = scmp.eq.s32.totalorder %s15, 0
    %p98 = por %p96, %p97
    %s99 = ssub.s32 %s16, %s28
    %p100 = scmp.eq.s32.totalorder %s99, 0
    %s102 = sadd.s32 %s101, 1
    %s103 = scalar_select %p100, %s101, %s102
    %p106 = pneg %p100
    %p107 = scmp.eq.s32.totalorder %s9, 3
    %p108 = por %p106, %p107
    %p109 = scmp.ne.s32.totalorder %s101, %s104
    %p110 = scmp.eq.s32.totalorder %s9, 0
    %p111 = por %p109, %p110
    %p112 = scmp.ne.s32.totalorder %s101, %s104
    %p113 = scmp.eq.s32.totalorder %s14, 3
    %p114 = por %p112, %p113
    %p115 = scmp.ne.s32.totalorder %s104, %s105
    %p116 = scmp.eq.s32.totalorder %s14, 0
    %p117 = por %p115, %p116
    %p118 = scmp.ne.s32.totalorder %s104, %s105
    %p119 = scmp.eq.s32.totalorder %s15, 3
    %p120 = por %p118, %p119
    %p122 = scmp.ne.s32.totalorder %s105, %s121
    %p123 = scmp.eq.s32.totalorder %s15, 0
    %p124 = por %p122, %p123
    %p125 = scmp.le.s32.totalorder 1, %s9
    %p126 = scmp.lt.s32.totalorder %s9, 5
    %p127 = pnand %p125, %p126
    %p128 = pneg %p127
    // Predicated region
    $region9: #{dmhnet_forward.1} parent=5 // pred_check
      _
    $region10: #{dmhnet_forward.1} parent=5 // pred_check_branch
      %130 = sbr.rel (%p127) target = $region12
    $region11: #{dmhnet_forward.1} parent=5 // pred_region
      %s131 = ssub.s32 %s9, 1
      // Predicated region
      $region13: #{dmhnet_forward.1} parent=11 // pred_check
        %p132 = pneg %p70
      $region14: #{dmhnet_forward.1} parent=11 // pred_check_branch
        %134 = sbr.rel (%p132) target = $region16
      $region15: #{dmhnet_forward.1} parent=11 // pred_region
        _
      $region16: #{dmhnet_forward.1} parent=11 // pred_fallthru
        _
      // Predicated region
      $region17: #{dmhnet_forward.1} parent=11 // pred_check
        %p135 = pneg %p91
      $region18: #{dmhnet_forward.1} parent=11 // pred_check_branch
        %137 = sbr.rel (%p135) target = $region20
      $region19: #{dmhnet_forward.1} parent=11 // pred_region
        _
      $region20: #{dmhnet_forward.1} parent=11 // pred_fallthru
        _
    $region12: #{dmhnet_forward.1} parent=5 // pred_fallthru
      _
    %p138 = scmp.lt.s32.totalorder %s9, 4
    // Predicated region
    $region21: #{dmhnet_forward.1} parent=5 // pred_check
      %p139 = pneg %p138
    $region22: #{dmhnet_forward.1} parent=5 // pred_check_branch
      %141 = sbr.rel (%p139) target = $region24
    $region23: #{dmhnet_forward.1} parent=5 // pred_region
      // Predicated region
      $region25: #{dmhnet_forward.1} parent=23 // pred_check
        %p142 = pneg %p43
      $region26: #{dmhnet_forward.1} parent=23 // pred_check_branch
        %144 = sbr.rel (%p142) target = $region28
      $region27: #{dmhnet_forward.1} parent=23 // pred_region
        %s145 = smul.u32 2, %s17
        %p146 = scmp.lt.s32.totalorder %s16, 3
        %s147 = scalar_select %p146, %s16, 3
        %p148 = scmp.lt.s32.totalorder %s145, 1
        %s149 = scalar_select %p148, %s145, 1
        %s150 = smul.addr %s147, 40
        %s151 = sadd.s32 %s149, %s150
        %s152 = smul.addr %s151, 4
        %s153 = scalar_lea.vmem %s0, %s152
        %s154 = smul.u32 2, %s17
      $region28: #{dmhnet_forward.1} parent=23 // pred_fallthru
        _
    $region24: #{dmhnet_forward.1} parent=5 // pred_fallthru
      _
    %p155 = scmp.le.s32.totalorder 1, %s9
    %p156 = scmp.lt.s32.totalorder %s9, 5
    %p157 = pnand %p155, %p156
    %p158 = pneg %p157
    // Predicated region
    $region29: #{dmhnet_forward.1} parent=5 // pred_check
      _
    $region30: #{dmhnet_forward.1} parent=5 // pred_check_branch
      %160 = sbr.rel (%p157) target = $region32
    $region31: #{dmhnet_forward.1} parent=5 // pred_region
      %s161 = ssub.s32 %s9, 1
      %s162 = smul.u32 2, %s19
      %p163 = scmp.lt.s32.totalorder %s18, 3
      %s164 = scalar_select %p163, %s18, 3
      %p165 = scmp.lt.s32.totalorder %s162, 1
      %s166 = scalar_select %p165, %s162, 1
      %s167 = smul.addr %s164, 40
      %s168 = sadd.s32 %s166, %s167
      %s169 = smul.addr %s168, 4
      %s170 = scalar_lea.vmem %s0, %s169
      %p171 = pneg %p49
      %p172 = pneg %p46
      %p173 = pneg %p70
      %p174 = pneg %p67
      %p175 = pneg %p91
      %p176 = pneg %p88
      %p177 = pneg %p117
      %p178 = pneg %p114
      %p179 = scmp.lt.s32.totalorder %s18, 3
      %s180 = scalar_select %p179, %s18, 3
      %s181 = smul.addr %s180, 2
      %s182 = smul.addr %s181, 8
      %s183 = scalar_lea.vmem %s3, %s182
      %s184 = smul.u32 2, %s19
      %p185 = scmp.lt.s32.totalorder %s18, 3
      %s186 = scalar_select %p185, %s18, 3
      %p187 = scmp.lt.s32.totalorder %s184, 1
      %s188 = scalar_select %p187, %s184, 1
      %s189 = smul.addr %s186, 40
      %s190 = sadd.s32 %s188, %s189
      %s191 = smul.addr %s190, 4
      %s192 = scalar_lea.vmem %s0, %s191
      %s193 = smul.u32 2, %s19
      %p194 = scmp.lt.s32.totalorder %s18, 3
      %s195 = scalar_select %p194, %s18, 3
      %s196 = smul.addr %s195, 2
      %s197 = smul.addr %s196, 8
      %s198 = scalar_lea.vmem %s3, %s197
      %p200 = scmp.eq.s32.totalorder %s19, 0
      // Predicated region
      $region33: #{dmhnet_forward.1} parent=31 // pred_check
        %p201 = pneg %p200
      $region34: #{dmhnet_forward.1} parent=31 // pred_check_branch
        %203 = sbr.rel (%p201) target = $region36
      $region35: #{dmhnet_forward.1} parent=31 // pred_region
        %204 = vst [vmem:[#allocation2] sm:$0xff] 0.0
        %205 = vst [vmem:[#allocation2 + $0x8] sm:$0xff] 0.0
      $region36: #{dmhnet_forward.1} parent=31 // pred_fallthru
        _
      %v206 = vld [vmem:[%s1] sm:$0xff]
      %v207 = vld [vmem:[%s1 + $0x8] sm:$0xff]
      %v208 = vld [vmem:[%s192] sm:$0xff]
      %v209 = vld [vmem:[%s192 + $0x8] sm:$0xff]
      %v210 = vld [vmem:[%s192 + $0x10] sm:$0xff]
      %v211 = vld [vmem:[%s192 + $0x18] sm:$0xff]
      %v212 = vld [vmem:[%s192 + $0x20] sm:$0xff]
      %v213 = vld [vmem:[%s192 + $0x28] sm:$0xff]
      %v214 = vld [vmem:[%s192 + $0x30] sm:$0xff]
      %v215 = vld [vmem:[%s192 + $0x38] sm:$0xff]
      %v216 = vld [vmem:[%s192 + $0x40] sm:$0xff]
      %v217 = vld [vmem:[%s192 + $0x48] sm:$0xff]
      %v218 = vld [vmem:[%s192 + $0x50] sm:$0xff]
      %v219 = vld [vmem:[%s192 + $0x58] sm:$0xff]
      %v220 = vld [vmem:[%s192 + $0x60] sm:$0xff]
      %v221 = vld [vmem:[%s192 + $0x68] sm:$0xff]
      %v222 = vld [vmem:[%s192 + $0x70] sm:$0xff]
      %v223 = vld [vmem:[%s192 + $0x78] sm:$0xff]
      %v224 = vld [vmem:[%s192 + $0x80] sm:$0xff]
      %v225 = vld [vmem:[%s192 + $0x88] sm:$0xff]
      %v226 = vld [vmem:[%s192 + $0x90] sm:$0xff]
      %v227 = vld [vmem:[%s192 + $0x98] sm:$0xff]
      %v228 = vld [vmem:[%s2] sm:$0xff]
      %v229 = vld [vmem:[%s2 + $0x8] sm:$0xff]
      %231 = vset.pattern.permute.xlu0 0
      %232 = vperm.xlu0 %231, %v228
      %v233 = vpop.permute.xlu0 %232
      %236 = vset.pattern.permute.xlu0 0
      %237 = vperm.xlu0 %236, %v229
      %v238 = vpop.permute.xlu0 %237
      %v242 = vunpack.c.l.b16 %v206
      %v243 = vunpack.c.h.b16 %v206
      %v244 = vunpack.c.l.b16 %v207
      %v245 = vunpack.c.h.b16 %v207
      %v246 = vpack.c.b16 %v244, %v242
      %v247 = vpack.c.b16 %v245, %v243
      %v269 = vunpack.c.l.b16 %v208
      %v270 = vunpack.c.h.b16 %v208
      %v271 = vunpack.c.l.b16 %v209
      %v272 = vunpack.c.h.b16 %v209
      %v273 = vunpack.c.l.b16 %v210
      %v274 = vunpack.c.h.b16 %v210
      %v275 = vunpack.c.l.b16 %v211
      %v276 = vunpack.c.h.b16 %v211
      %v277 = vunpack.c.l.b16 %v212
      %v278 = vunpack.c.h.b16 %v212
      %v279 = vunpack.c.l.b16 %v213
      %v280 = vunpack.c.h.b16 %v213
      %v281 = vunpack.c.l.b16 %v214
      %v282 = vunpack.c.h.b16 %v214
      %v283 = vunpack.c.l.b16 %v215
      %v284 = vunpack.c.h.b16 %v215
      %v285 = vunpack.c.l.b16 %v216
      %v286 = vunpack.c.h.b16 %v216
      %v287 = vunpack.c.l.b16 %v217
      %v288 = vunpack.c.h.b16 %v217
      %v289 = vunpack.c.l.b16 %v218
      %v290 = vunpack.c.h.b16 %v218
      %v291 = vunpack.c.l.b16 %v219
      %v292 = vunpack.c.h.b16 %v219
      %v293 = vunpack.c.l.b16 %v220
      %v294 = vunpack.c.h.b16 %v220
      %v295 = vunpack.c.l.b16 %v221
      %v296 = vunpack.c.h.b16 %v221
      %v297 = vunpack.c.l.b16 %v222
      %v298 = vunpack.c.h.b16 %v222
      %v299 = vunpack.c.l.b16 %v223
      %v300 = vunpack.c.h.b16 %v223
      %v301 = vunpack.c.l.b16 %v224
      %v302 = vunpack.c.h.b16 %v224
      %v303 = vunpack.c.l.b16 %v225
      %v304 = vunpack.c.h.b16 %v225
      %v305 = vunpack.c.l.b16 %v226
      %v306 = vunpack.c.h.b16 %v226
      %v307 = vunpack.c.l.b16 %v227
      %v308 = vunpack.c.h.b16 %v227
      %v309 = vpack.c.b16 %v271, %v269
      %v310 = vpack.c.b16 %v272, %v270
      %v311 = vpack.c.b16 %v275, %v273
      %v312 = vpack.c.b16 %v276, %v274
      %v313 = vpack.c.b16 %v279, %v277
      %v314 = vpack.c.b16 %v280, %v278
      %v315 = vpack.c.b16 %v283, %v281
      %v316 = vpack.c.b16 %v284, %v282
      %v317 = vpack.c.b16 %v287, %v285
      %v318 = vpack.c.b16 %v288, %v286
      %v319 = vpack.c.b16 %v291, %v289
      %v320 = vpack.c.b16 %v292, %v290
      %v321 = vpack.c.b16 %v295, %v293
      %v322 = vpack.c.b16 %v296, %v294
      %v323 = vpack.c.b16 %v299, %v297
      %v324 = vpack.c.b16 %v300, %v298
      %v325 = vpack.c.b16 %v303, %v301
      %v326 = vpack.c.b16 %v304, %v302
      %v327 = vpack.c.b16 %v307, %v305
      %v328 = vpack.c.b16 %v308, %v306
      %vm349 = vcmask 261120
      %v351 = vsel %vm349, %v247, 0
      %353 = vmatprep.subr.bf16.mxu0 %v310
      %354 = vmatpush1.bf16.msra.mxu0 %v309
      %355 = vmatprep.subr.bf16.mxu0 %v312
      %356 = vmatpush1.bf16.msra.mxu0 %v311
      %357 = vmatprep.subr.bf16.mxu0 %v314
      %358 = vmatpush1.bf16.msra.mxu0 %v313
      %359 = vmatprep.subr.bf16.mxu0 %v316
      %360 = vmatpush1.bf16.msra.mxu0 %v315
      %361 = vmatprep.subr.bf16.mxu0 %v318
      %362 = vmatpush1.bf16.msra.mxu0 %v317
      %363 = vmatprep.subr.bf16.mxu0 %v320
      %364 = vmatpush1.bf16.msra.mxu0 %v319
      %365 = vmatprep.subr.bf16.mxu0 %v322
      %366 = vmatpush1.bf16.msra.mxu0 %v321
      %367 = vmatprep.subr.bf16.mxu0 %v324
      %368 = vmatpush1.bf16.msra.mxu0 %v323
      %369 = vmatprep.subr.bf16.mxu0 %v326
      %370 = vmatpush1.bf16.msra.mxu0 %v325
      %371 = vmatprep.subr.bf16.mxu0 %v328
      %372 = vmatpush1.bf16.msra.mxu0 %v327
      %373 = vmatprep.subr.bf16.mxu0 0
      %374 = vmatpush1.bf16.msra.mxu0 0
      %375 = vmatprep.subr.bf16.mxu0 0
      %376 = vmatpush1.bf16.msra.mxu0 0
      %377 = vmatprep.subr.bf16.mxu0 0
      %378 = vmatpush1.bf16.msra.mxu0 0
      %379 = vmatprep.subr.bf16.mxu0 0
      %380 = vmatpush1.bf16.msra.mxu0 0
      %381 = vmatprep.subr.bf16.mxu0 0
      %382 = vmatpush1.bf16.msra.mxu0 0
      %383 = vmatprep.subr.bf16.mxu0 0
      %384 = vmatpush1.bf16.msra.mxu0 0
      %385 = vmatprep.mubr.bf16.mxu0 %v351
      %386 = vmatmul.mubr.bf16.gmra.mrb[0].mxu0 %v246
      %v387 = vpop.f32.mrb[0].mxu0
      %v388 = vadd.f32 %v233, %v387
      %v389 = vpop.f32.mrb[0].mxu0
      %v390 = vadd.f32 %v233, %v389
      %v391 = vpop.f32.mrb[0].mxu0
      %v392 = vadd.f32 %v238, %v391
      %v393 = vpop.f32.mrb[0].mxu0
      %v394 = vadd.f32 %v238, %v393
      %395 = vdwg.mxu0
      %v396 = vmax.f32 %v388, 0.0
      %v397 = vmax.f32 %v390, 0.0
      %v398 = vmax.f32 %v392, 0.0
      %v399 = vmax.f32 %v394, 0.0
      %v400 = vadd.f32 %v396, %v397
      %v401 = vadd.f32 %v398, %v399
      %v402 = vld [vmem:[#allocation2] sm:$0xff]
      %v403 = vld [vmem:[#allocation2 + $0x8] sm:$0xff]
      %v404 = vadd.f32 %v402, %v400
      %v405 = vadd.f32 %v403, %v401
      %406 = vst [vmem:[#allocation2] sm:$0xff] %v404
      %407 = vst [vmem:[#allocation2 + $0x8] sm:$0xff] %v405
      // Predicated region
      $region37: #{dmhnet_forward.1} parent=31 // pred_check
        %p408 = pneg %p200
      $region38: #{dmhnet_forward.1} parent=31 // pred_check_branch
        %410 = sbr.rel (%p408) target = $region40
      $region39: #{dmhnet_forward.1} parent=31 // pred_region
        %v411 = vld [vmem:[#allocation2] sm:$0xff]
        %v412 = vld [vmem:[#allocation2 + $0x8] sm:$0xff]
        %v413 = vmul.f32 %v411, 0.00390625
        %v414 = vmul.f32 %v412, 0.00390625
        %415 = vst [vmem:[%s198] sm:$0xff] %v413
        %416 = vst [vmem:[%s198 + $0x8] sm:$0xff] %v414
      $region40: #{dmhnet_forward.1} parent=31 // pred_fallthru
        _
      %p417 = scmp.lt.s32.totalorder %s18, 3
      %s418 = scalar_select %p417, %s18, 3
      %s419 = smul.addr %s418, 2
      %s420 = smul.addr %s419, 8
      %s421 = scalar_lea.vmem %s3, %s420
      // Predicated region
      $region41: #{dmhnet_forward.1} parent=31 // pred_check
        %p422 = pneg %p114
      $region42: #{dmhnet_forward.1} parent=31 // pred_check_branch
        %424 = sbr.rel (%p422) target = $region44
      $region43: #{dmhnet_forward.1} parent=31 // pred_region
        _
      $region44: #{dmhnet_forward.1} parent=31 // pred_fallthru
        _
    $region32: #{dmhnet_forward.1} parent=5 // pred_fallthru
      _
    %p425 = scmp.le.s32.totalorder 2, %s9
    // Predicated region
    $region45: #{dmhnet_forward.1} parent=5 // pred_check
      %p426 = pneg %p425
    $region46: #{dmhnet_forward.1} parent=5 // pred_check_branch
      %428 = sbr.rel (%p426) target = $region48
    $region47: #{dmhnet_forward.1} parent=5 // pred_region
      %s429 = ssub.s32 %s9, 2
      // Predicated region
      $region49: #{dmhnet_forward.1} parent=47 // pred_check
        %p430 = pneg %p120
      $region50: #{dmhnet_forward.1} parent=47 // pred_check_branch
        %432 = sbr.rel (%p430) target = $region52
      $region51: #{dmhnet_forward.1} parent=47 // pred_region
        %p433 = scmp.lt.s32.totalorder %s20, 3
        %s434 = scalar_select %p433, %s20, 3
        %s435 = smul.addr %s434, 2
        %s436 = smul.addr %s435, 8
        %s437 = scalar_lea.vmem %s3, %s436
      $region52: #{dmhnet_forward.1} parent=47 // pred_fallthru
        _
    $region48: #{dmhnet_forward.1} parent=5 // pred_fallthru
      _
  $region6: #{dmhnet_forward.1} parent=0 // loop_footer
    %s13 = sadd.s32 1, %s9
  $region7: #{dmhnet_forward.1} parent=0 // loop_footer_branch
    %8 = sbr.rel target = $region3
  $region8: #{dmhnet_forward.1} parent=0 // loop_exit
    _

</llo_original>
